<compile_context>
chip_gen: v7x
topology: tpu7x:2x2x1
jax: 0.10.0
libtpu: 0.0.40
codegen_flags: <defaults>
</compile_context>

<pallas_src>
import functools

import jax
import jax.numpy as jnp
from jax.experimental import pallas as pl
from jax.experimental.pallas import tpu as pltpu

_LANE = 128
_SUBLANE = 8
_OUT_PAD = 128  # lane-dense output slab: [q1, q2, 0, ..., 0]


def _round_up(x, m):
    return (x + m - 1) // m * m


# ---------------------------------------------------------------------------
# Kernel
# ---------------------------------------------------------------------------
def _critic_kernel(x_ref,
                   w1_ref, b1_ref,
                   w2a_ref, b2a_ref,
                   w2b_ref, b2b_ref,
                   w3_ref, b3_ref,
                   out_ref, *, hp):
    """One batch tile of the twin Q-network forward pass.

    x_ref:  (TB, Dp)       input tile (states|actions, zero padded)
    w1_ref: (Dp, 2*Hp)     fused [W1 | W4]
    w2a/w2b: (Hp, Hp)      W2 / W5 (zero padded)
    w3_ref: (2*Hp, 128)    block-structured [W3 -> lane 0 ; W6 -> lane 1]
    out_ref:(TB, 128)      [q1, q2, 0, ...]
    """
    wdt = w1_ref.dtype
    x = x_ref[...]

    # ---- fused layer 1 for both Q-nets (one MXU pass) ----
    h = jnp.dot(x, w1_ref[...], preferred_element_type=jnp.float32) + b1_ref[...]
    h = jnp.maximum(h, 0.0)

    # ---- layer 2 per network (elementwise path stays f32; MXU inputs in wdt) ----
    h1 = h[:, :hp].astype(wdt)
    h2 = h[:, hp:].astype(wdt)
    g1 = jnp.dot(h1, w2a_ref[...], preferred_element_type=jnp.float32) + b2a_ref[...]
    g1 = jnp.maximum(g1, 0.0)
    g2 = jnp.dot(h2, w2b_ref[...], preferred_element_type=jnp.float32) + b2b_ref[...]
    g2 = jnp.maximum(g2, 0.0)

    # ---- fused layer 3: both q values into one lane-dense slab ----
    q = (jnp.dot(g1.astype(wdt), w3_ref[:hp, :], preferred_element_type=jnp.float32)
         + jnp.dot(g2.astype(wdt), w3_ref[hp:, :], preferred_element_type=jnp.float32)
         + b3_ref[...])
    out_ref[...] = q.astype(out_ref.dtype)


# ---------------------------------------------------------------------------
# Parameter init (mirrors the PyTorch __init__) and one-time packing
# ---------------------------------------------------------------------------
def init_critic_params(key, state_size, action_size, hidden_size, init_w=0.003):
    """uniform(-init_w, init_w) init; weights stored transposed (in, out)."""
    in_dim = state_size + action_size
    shapes = {
        "w1": (in_dim, hidden_size), "b1": (1, hidden_size),
        "w2": (hidden_size, hidden_size), "b2": (1, hidden_size),
        "w3": (hidden_size, 1), "b3": (1, 1),
        "w4": (in_dim, hidden_size), "b4": (1, hidden_size),
        "w5": (hidden_size, hidden_size), "b5": (1, hidden_size),
        "w6": (hidden_size, 1), "b6": (1, 1),
    }
    params = {}
    keys = jax.random.split(key, len(shapes))
    for k, (name, shp) in zip(keys, shapes.items()):
        params[name] = jax.random.uniform(
            k, shp, dtype=jnp.float32, minval=-init_w, maxval=init_w)
    return params


def pack_critic_params(params, weight_dtype=jnp.float32):
    """Pack + zero-pad weights once (do NOT redo per forward call)."""
    D, H = params["w1"].shape
    Dp = _round_up(D, _LANE)
    Hp = _round_up(H, _LANE)
    wdt = weight_dtype

    w1f = jnp.zeros((Dp, 2 * Hp), wdt)
    w1f = w1f.at[:D, :H].set(params["w1"].astype(wdt))
    w1f = w1f.at[:D, Hp:Hp + H].set(params["w4"].astype(wdt))
    b1f = jnp.zeros((1, 2 * Hp), jnp.float32)
    b1f = b1f.at[:, :H].set(params["b1"])
    b1f = b1f.at[:, Hp:Hp + H].set(params["b4"])

    def pad_hh(w):
        return jnp.zeros((Hp, Hp), wdt).at[:H, :H].set(w.astype(wdt))

    def pad_bh(b):
        return jnp.zeros((1, Hp), jnp.float32).at[:, :H].set(b)

    w2a, b2a = pad_hh(params["w2"]), pad_bh(params["b2"])
    w2b, b2b = pad_hh(params["w5"]), pad_bh(params["b5"])

    w3f = jnp.zeros((2 * Hp, _OUT_PAD), wdt)
    w3f = w3f.at[:H, 0:1].set(params["w3"].astype(wdt))
    w3f = w3f.at[Hp:Hp + H, 1:2].set(params["w6"].astype(wdt))
    b3f = jnp.zeros((1, _OUT_PAD), jnp.float32)
    b3f = b3f.at[:, 0:1].set(params["b3"])
    b3f = b3f.at[:, 1:2].set(params["b6"])

    return dict(w1=w1f, b1=b1f, w2a=w2a, b2a=b2a, w2b=w2b, b2b=b2b,
                w3=w3f, b3=b3f, D=D, H=H, Dp=Dp, Hp=Hp)


# ---------------------------------------------------------------------------
# Forward wrapper
# ---------------------------------------------------------------------------
def critic_forward(states, actions, packed, *, batch_tile=512):
    """Returns (q1, q2), each (B, 1) float32, matching the PyTorch Critic."""
    B, S = states.shape
    A = actions.shape[1]
    D, Dp, Hp = packed["D"], packed["Dp"], packed["Hp"]
    assert S + A == D, "state/action sizes must match the packed parameters"
    wdt = packed["w1"].dtype

    # Batch tiling: TB multiple of 8 sublanes; Bp multiple of TB.
    TB = _round_up(min(batch_tile, _round_up(B, _SUBLANE)), _SUBLANE)
    Bp = _round_up(B, TB)

    # Lane-aligned input slab ([states | actions], zero padded).  Avoids a separate
    # un-padded concat buffer in HBM.
    x = jnp.zeros((Bp, Dp), wdt)
    x = x.at[:B, :S].set(states.astype(wdt))
    x = x.at[:B, S:D].set(actions.astype(wdt))

    weight_args = (packed["w1"], packed["b1"], packed["w2a"], packed["b2a"],
                   packed["w2b"], packed["b2b"], packed["w3"], packed["b3"])

    def resident(a):
        # Constant block index -> stays VMEM-resident across all grid steps.
        return pl.BlockSpec(a.shape, lambda i: tuple(0 for _ in a.shape))

    in_specs = [pl.BlockSpec((TB, Dp), lambda i: (i, 0))]
    in_specs += [resident(a) for a in weight_args]
    out_spec = pl.BlockSpec((TB, _OUT_PAD), lambda i: (i, 0))

    # Advisory cost estimate for XLA's scheduler.
    flops = 2 * Bp * (Dp * 2 * Hp + 2 * Hp * Hp + 2 * Hp * _OUT_PAD)
    bytes_accessed = (x.size * x.dtype.itemsize
                      + sum(a.size * a.dtype.itemsize for a in weight_args)
                      + Bp * _OUT_PAD * 4)
    cost = pl.CostEstimate(flops=flops, transcendentals=0,
                           bytes_accessed=bytes_accessed)

    # Explicit VMEM budget: resident weights + double-buffered x/out tiles + margin,
    # clamped to the v7x physical VMEM size.
    weight_bytes = sum(a.size * a.dtype.itemsize for a in weight_args)
    io_bytes = TB * Dp * x.dtype.itemsize + TB * _OUT_PAD * 4
    vmem_budget = int(min(max(2 * (weight_bytes + io_bytes) + (4 << 20), 16 << 20),
                          64 << 20))
    # TODO(synk): for hidden_size >= ~2048 in f32 the resident HxH weights no longer
    # fit v7x's 64 MiB VMEM; a K/N tiling grid axis over layer 2 would be needed.

    out = pl.pallas_call(
        functools.partial(_critic_kernel, hp=Hp),
        out_shape=jax.ShapeDtypeStruct((Bp, _OUT_PAD), jnp.float32),
        grid=(Bp // TB,),
        in_specs=in_specs,
        out_specs=out_spec,
        compiler_params=pltpu.CompilerParams(
            dimension_semantics=("parallel",),
            vmem_limit_bytes=vmem_budget),
        cost_estimate=cost,
    )(x, *weight_args)

    q1 = out[:B, 0:1]
    q2 = out[:B, 1:2]
    return q1, q2


# ---------------------------------------------------------------------------
# Pure-JAX reference (for correctness check)
# ---------------------------------------------------------------------------
def _reference_forward(states, actions, params):
    x = jnp.concatenate([states, actions], axis=1)
    h1 = jax.nn.relu(x @ params["w1"] + params["b1"])
    h1 = jax.nn.relu(h1 @ params["w2"] + params["b2"])
    q1 = h1 @ params["w3"] + params["b3"]
    h2 = jax.nn.relu(x @ params["w4"] + params["b4"])
    h2 = jax.nn.relu(h2 @ params["w5"] + params["b5"])
    q2 = h2 @ params["w6"] + params["b6"]
    return q1, q2


if __name__ == "__main__":
    batch, state_size, action_size, hidden_size = 2, 8, 4, 32

    key = jax.random.PRNGKey(0)
    k_params, k_s, k_a = jax.random.split(key, 3)

    params = init_critic_params(k_params, state_size, action_size, hidden_size)
    states = jax.random.normal(k_s, (batch, state_size), dtype=jnp.float32)
    actions = jax.random.normal(k_a, (batch, action_size), dtype=jnp.float32)

    r1, r2 = _reference_forward(states, actions, params)

    # f32 weight path: exact check against the pure-JAX reference.
    packed_f32 = pack_critic_params(params, weight_dtype=jnp.float32)
    q1, q2 = critic_forward(states, actions, packed_f32)
    q1 = jax.block_until_ready(q1)
    q2 = jax.block_until_ready(q2)
    assert q1.shape == (batch, 1) and q2.shape == (batch, 1)
    assert jnp.allclose(q1, r1, atol=1e-5)
    assert jnp.allclose(q2, r2, atol=1e-5)

    # bf16 weight path (bandwidth-optimized, f32 accumulation): loose tolerance.
    packed_bf16 = pack_critic_params(params, weight_dtype=jnp.bfloat16)
    qb1, qb2 = critic_forward(states, actions, packed_bf16)
    qb1 = jax.block_until_ready(qb1)
    qb2 = jax.block_until_ready(qb2)
    assert jnp.allclose(qb1, r1, atol=1e-2, rtol=1e-2)
    assert jnp.allclose(qb2, r2, atol=1e-2, rtol=1e-2)

    print("KERNEL_OK")
</pallas_src>

<mosaic_0001>
module attributes {stable_mosaic.version = 11 : i64} {
  func.func @_critic_kernel(%arg0: i32, %arg1: memref<8x128xf32, #tpu.memory_space<vmem>>, %arg2: memref<128x256xf32, #tpu.memory_space<vmem>>, %arg3: memref<1x256xf32, #tpu.memory_space<vmem>>, %arg4: memref<128x128xf32, #tpu.memory_space<vmem>>, %arg5: memref<1x128xf32, #tpu.memory_space<vmem>>, %arg6: memref<128x128xf32, #tpu.memory_space<vmem>>, %arg7: memref<1x128xf32, #tpu.memory_space<vmem>>, %arg8: memref<256x128xf32, #tpu.memory_space<vmem>>, %arg9: memref<1x128xf32, #tpu.memory_space<vmem>>, %arg10: memref<8x128xf32, #tpu.memory_space<vmem>>) attributes {dimension_semantics = [#tpu.dimension_semantics<parallel>], iteration_bounds = array<i64: 1>, scalar_prefetch = 0 : i64, scratch_operands = 0 : i64, tpu.core_type = #tpu.core_type<tc>, window_params = [{transform_indices = @transform_0, window_bounds = array<i64: 8, 128>}, {pipeline_mode = #tpu.pipeline_mode<synchronous>, transform_indices = @transform_1, window_bounds = array<i64: 128, 256>}, {pipeline_mode = #tpu.pipeline_mode<synchronous>, transform_indices = @transform_2, window_bounds = array<i64: 1, 256>}, {pipeline_mode = #tpu.pipeline_mode<synchronous>, transform_indices = @transform_3, window_bounds = array<i64: 128, 128>}, {pipeline_mode = #tpu.pipeline_mode<synchronous>, transform_indices = @transform_4, window_bounds = array<i64: 1, 128>}, {pipeline_mode = #tpu.pipeline_mode<synchronous>, transform_indices = @transform_5, window_bounds = array<i64: 128, 128>}, {pipeline_mode = #tpu.pipeline_mode<synchronous>, transform_indices = @transform_6, window_bounds = array<i64: 1, 128>}, {pipeline_mode = #tpu.pipeline_mode<synchronous>, transform_indices = @transform_7, window_bounds = array<i64: 256, 128>}, {pipeline_mode = #tpu.pipeline_mode<synchronous>, transform_indices = @transform_8, window_bounds = array<i64: 1, 128>}, {transform_indices = @transform_9, window_bounds = array<i64: 8, 128>}]} {
    %c0 = arith.constant 0 : index
    %c0_0 = arith.constant 0 : index
    %0 = vector.load %arg1[%c0, %c0_0] : memref<8x128xf32, #tpu.memory_space<vmem>>, vector<8x128xf32>
    %c0_1 = arith.constant 0 : index
    %c0_2 = arith.constant 0 : index
    %1 = vector.load %arg2[%c0_1, %c0_2] : memref<128x256xf32, #tpu.memory_space<vmem>>, vector<128x256xf32>
    %cst = arith.constant dense<0.000000e+00> : vector<8x256xf32>
    %2 = tpu.matmul %0, %1, %cst {dimension_numbers = #tpu.dot_dimension_numbers<[1], [0], [0], [1], [0, 0, 1, 1], [], []>} : vector<8x128xf32>, vector<128x256xf32>, vector<8x256xf32> -> vector<8x256xf32>
    %c0_3 = arith.constant 0 : index
    %c0_4 = arith.constant 0 : index
    %3 = vector.load %arg3[%c0_3, %c0_4] : memref<1x256xf32, #tpu.memory_space<vmem>>, vector<1x256xf32>
    %4 = vector.broadcast %3 : vector<1x256xf32> to vector<8x256xf32>
    %5 = arith.addf %2, %4 : vector<8x256xf32>
    %cst_5 = arith.constant 0.000000e+00 : f32
    %6 = vector.broadcast %cst_5 : f32 to vector<8x256xf32>
    %7 = arith.maximumf %5, %6 : vector<8x256xf32>
    %8 = vector.extract_strided_slice %7 {offsets = [0, 0], sizes = [8, 128], strides = [1, 1]} : vector<8x256xf32> to vector<8x128xf32>
    %9 = vector.extract_strided_slice %7 {offsets = [0, 128], sizes = [8, 128], strides = [1, 1]} : vector<8x256xf32> to vector<8x128xf32>
    %c0_6 = arith.constant 0 : index
    %c0_7 = arith.constant 0 : index
    %10 = vector.load %arg4[%c0_6, %c0_7] : memref<128x128xf32, #tpu.memory_space<vmem>>, vector<128x128xf32>
    %cst_8 = arith.constant dense<0.000000e+00> : vector<8x128xf32>
    %11 = tpu.matmul %8, %10, %cst_8 {dimension_numbers = #tpu.dot_dimension_numbers<[1], [0], [0], [1], [0, 0, 1, 1], [], []>} : vector<8x128xf32>, vector<128x128xf32>, vector<8x128xf32> -> vector<8x128xf32>
    %c0_9 = arith.constant 0 : index
    %c0_10 = arith.constant 0 : index
    %12 = vector.load %arg5[%c0_9, %c0_10] : memref<1x128xf32, #tpu.memory_space<vmem>>, vector<1x128xf32>
    %13 = vector.broadcast %12 : vector<1x128xf32> to vector<8x128xf32>
    %14 = arith.addf %11, %13 : vector<8x128xf32>
    %cst_11 = arith.constant 0.000000e+00 : f32
    %15 = vector.broadcast %cst_11 : f32 to vector<8x128xf32>
    %16 = arith.maximumf %14, %15 : vector<8x128xf32>
    %c0_12 = arith.constant 0 : index
    %c0_13 = arith.constant 0 : index
    %17 = vector.load %arg6[%c0_12, %c0_13] : memref<128x128xf32, #tpu.memory_space<vmem>>, vector<128x128xf32>
    %cst_14 = arith.constant dense<0.000000e+00> : vector<8x128xf32>
    %18 = tpu.matmul %9, %17, %cst_14 {dimension_numbers = #tpu.dot_dimension_numbers<[1], [0], [0], [1], [0, 0, 1, 1], [], []>} : vector<8x128xf32>, vector<128x128xf32>, vector<8x128xf32> -> vector<8x128xf32>
    %c0_15 = arith.constant 0 : index
    %c0_16 = arith.constant 0 : index
    %19 = vector.load %arg7[%c0_15, %c0_16] : memref<1x128xf32, #tpu.memory_space<vmem>>, vector<1x128xf32>
    %20 = vector.broadcast %19 : vector<1x128xf32> to vector<8x128xf32>
    %21 = arith.addf %18, %20 : vector<8x128xf32>
    %cst_17 = arith.constant 0.000000e+00 : f32
    %22 = vector.broadcast %cst_17 : f32 to vector<8x128xf32>
    %23 = arith.maximumf %21, %22 : vector<8x128xf32>
    %c0_18 = arith.constant 0 : index
    %c0_19 = arith.constant 0 : index
    %24 = vector.load %arg8[%c0_18, %c0_19] : memref<256x128xf32, #tpu.memory_space<vmem>>, vector<128x128xf32>
    %cst_20 = arith.constant dense<0.000000e+00> : vector<8x128xf32>
    %25 = tpu.matmul %16, %24, %cst_20 {dimension_numbers = #tpu.dot_dimension_numbers<[1], [0], [0], [1], [0, 0, 1, 1], [], []>} : vector<8x128xf32>, vector<128x128xf32>, vector<8x128xf32> -> vector<8x128xf32>
    %c128 = arith.constant 128 : index
    %c0_21 = arith.constant 0 : index
    %26 = vector.load %arg8[%c128, %c0_21] : memref<256x128xf32, #tpu.memory_space<vmem>>, vector<128x128xf32>
    %cst_22 = arith.constant dense<0.000000e+00> : vector<8x128xf32>
    %27 = tpu.matmul %23, %26, %cst_22 {dimension_numbers = #tpu.dot_dimension_numbers<[1], [0], [0], [1], [0, 0, 1, 1], [], []>} : vector<8x128xf32>, vector<128x128xf32>, vector<8x128xf32> -> vector<8x128xf32>
    %28 = arith.addf %25, %27 : vector<8x128xf32>
    %c0_23 = arith.constant 0 : index
    %c0_24 = arith.constant 0 : index
    %29 = vector.load %arg9[%c0_23, %c0_24] : memref<1x128xf32, #tpu.memory_space<vmem>>, vector<1x128xf32>
    %30 = vector.broadcast %29 : vector<1x128xf32> to vector<8x128xf32>
    %31 = arith.addf %28, %30 : vector<8x128xf32>
    %c0_25 = arith.constant 0 : index
    %c0_26 = arith.constant 0 : index
    %32 = vector.load %arg10[%c0_25, %c0_26] : memref<8x128xf32, #tpu.memory_space<vmem>>, vector<8x128xf32>
    tpu.vector_store %arg10[%c0_25, %c0_26], %31 {strides = array<i32>} : memref<8x128xf32, #tpu.memory_space<vmem>>, vector<8x128xf32>,
    return
  }
  func.func @transform_0(%arg0: i32) -> (i32, i32) {
    %c0_i32 = arith.constant 0 : i32
    %c0_i32_0 = arith.constant 0 : i32
    return %arg0, %c0_i32 : i32, i32
  }
  func.func @transform_1(%arg0: i32) -> (i32, i32) {
    %c0_i32 = arith.constant 0 : i32
    %c0_i32_0 = arith.constant 0 : i32
    %c0_i32_1 = arith.constant 0 : i32
    return %c0_i32, %c0_i32_0 : i32, i32
  }
  func.func @transform_2(%arg0: i32) -> (i32, i32) {
    %c0_i32 = arith.constant 0 : i32
    %c0_i32_0 = arith.constant 0 : i32
    %c0_i32_1 = arith.constant 0 : i32
    return %c0_i32, %c0_i32_0 : i32, i32
  }
  func.func @transform_3(%arg0: i32) -> (i32, i32) {
    %c0_i32 = arith.constant 0 : i32
    %c0_i32_0 = arith.constant 0 : i32
    %c0_i32_1 = arith.constant 0 : i32
    return %c0_i32, %c0_i32_0 : i32, i32
  }
  func.func @transform_4(%arg0: i32) -> (i32, i32) {
    %c0_i32 = arith.constant 0 : i32
    %c0_i32_0 = arith.constant 0 : i32
    %c0_i32_1 = arith.constant 0 : i32
    return %c0_i32, %c0_i32_0 : i32, i32
  }
  func.func @transform_5(%arg0: i32) -> (i32, i32) {
    %c0_i32 = arith.constant 0 : i32
    %c0_i32_0 = arith.constant 0 : i32
    %c0_i32_1 = arith.constant 0 : i32
    return %c0_i32, %c0_i32_0 : i32, i32
  }
  func.func @transform_6(%arg0: i32) -> (i32, i32) {
    %c0_i32 = arith.constant 0 : i32
    %c0_i32_0 = arith.constant 0 : i32
    %c0_i32_1 = arith.constant 0 : i32
    return %c0_i32, %c0_i32_0 : i32, i32
  }
  func.func @transform_7(%arg0: i32) -> (i32, i32) {
    %c0_i32 = arith.constant 0 : i32
    %c0_i32_0 = arith.constant 0 : i32
    %c0_i32_1 = arith.constant 0 : i32
    return %c0_i32, %c0_i32_0 : i32, i32
  }
  func.func @transform_8(%arg0: i32) -> (i32, i32) {
    %c0_i32 = arith.constant 0 : i32
    %c0_i32_0 = arith.constant 0 : i32
    %c0_i32_1 = arith.constant 0 : i32
    return %c0_i32, %c0_i32_0 : i32, i32
  }
  func.func @transform_9(%arg0: i32) -> (i32, i32) {
    %c0_i32 = arith.constant 0 : i32
    %c0_i32_0 = arith.constant 0 : i32
    return %arg0, %c0_i32 : i32, i32
  }
}

</mosaic_0001>

<llo_original>
// kernel: tpu_custom_call.1
$region0: #{tpu_custom_call.1}
  #allocation0 [shape = 'u32[]', space=smem, size = 0x4, offset = 0x4, fixed_abs, tag = 'smem constant byte address 0x4 - core index']
  #allocation1 [shape = 'u32[144,128]{1,0:T(1,128)}', space=vmem, size = 0x12000, scoped, tag = 'internal scratch']
  %s0 = inlined_call_operand.hbm [shape: f32[8,128], index: 0, kind: input, shape index: {}]
  %s1 = inlined_call_operand.hbm [shape: f32[128,256], index: 1, kind: input, shape index: {}]
  %s2 = inlined_call_operand.vmem [shape: f32[1,256], index: 2, kind: input, shape index: {}]
  %s3 = inlined_call_operand.hbm [shape: f32[128,128], index: 3, kind: input, shape index: {}]
  %s4 = inlined_call_operand.vmem [shape: f32[1,128], index: 4, kind: input, shape index: {}]
  %s5 = inlined_call_operand.hbm [shape: f32[128,128], index: 5, kind: input, shape index: {}]
  %s6 = inlined_call_operand.vmem [shape: f32[1,128], index: 6, kind: input, shape index: {}]
  %s7 = inlined_call_operand.hbm [shape: f32[256,128], index: 7, kind: input, shape index: {}]
  %s8 = inlined_call_operand.vmem [shape: f32[1,128], index: 8, kind: input, shape index: {}]
  %s9 = inlined_call_operand.hbm [shape: f32[8,128], index: 9, kind: output, shape index: {}]
  %s10 = sld [smem:[#allocation0]]
  $region66: #{tpu_custom_call.1} parent=0
    _
  %s12 = ssub.s32 1, %s10
  %s13 = scalar_select 0, %s12, %s10
  $region1: #{tpu_custom_call.1} parent=0
    #allocation2 [shape = 'u8[4096]{0}', space=vmem, size = 0x1000, scoped, tag = 'input window, operand 0, single buffered']
    #allocation3 [shape = 's32[1]{0}', space=sflag, size = 0x4, scoped, tag = 'scoped memory for tpu_custom_call.1']
    #allocation4 [shape = 's32[1]{0}', space=sflag, size = 0x4, scoped, tag = 'scoped memory for tpu_custom_call.1']
    #allocation5 [shape = 'u8[131072]{0}', space=vmem, size = 0x20000, scoped, tag = 'input window, operand 1, single buffered']
    #allocation6 [shape = 's32[1]{0}', space=sflag, size = 0x4, scoped, tag = 'scoped memory for tpu_custom_call.1']
    #allocation7 [shape = 'u8[65536]{0}', space=vmem, size = 0x10000, scoped, tag = 'input window, operand 3, single buffered']
    #allocation8 [shape = 'u8[65536]{0}', space=vmem, size = 0x10000, scoped, tag = 'input window, operand 5, single buffered']
    #allocation9 [shape = 's32[1]{0}', space=sflag, size = 0x4, scoped, tag = 'scoped memory for tpu_custom_call.1']
    #allocation10 [shape = 'u8[131072]{0}', space=vmem, size = 0x20000, scoped, tag = 'input window, operand 7, single buffered']
    #allocation11 [shape = 'u8[4096]{0}', space=vmem, size = 0x1000, scoped, tag = 'output window, operand 0, single buffered']
    %14 = vsyncpa [#allocation3], 0
    %15 = vsyncpa [#allocation6], 0
    %16 = vsyncpa [#allocation9], 0
    %17 = vsyncpa [#allocation4], 0
    // Predicated region
    $region2: #{tpu_custom_call.1} parent=1 // pred_check
      _
    $region3: #{tpu_custom_call.1} parent=1 // pred_check_branch
      %19 = sbr.rel (0) target = $region5
    $region4: #{tpu_custom_call.1} parent=1 // pred_region
      %s21 = ssub.s32 128, 128
      %22 = vsyncadd [#allocation3], %s21
      %s24 = sshll.u32 [#allocation2], 4
      %s25 = int_to_ptr.vmem [resolvable:$true] %s24
      %27 = dma.hbm_to_vmem [thread:$0]  %s0, 128, %s25, [#allocation3]
    $region5: #{tpu_custom_call.1} parent=1 // pred_fallthru
      _
    // Predicated region
    $region6: #{tpu_custom_call.1} parent=1 // pred_check
      _
    $region7: #{tpu_custom_call.1} parent=1 // pred_check_branch
      %29 = sbr.rel (0) target = $region9
    $region8: #{tpu_custom_call.1} parent=1 // pred_region
      %s31 = ssub.s32 4096, 4096
      %32 = vsyncadd [#allocation6], %s31
      %s33 = sshll.u32 [#allocation5], 4
      %s34 = int_to_ptr.vmem [resolvable:$true] %s33
      %39 = dma.hbm_to_vmem [thread:$0]  %s1, 4096, %s34, [#allocation6], 256, 256, 16
    $region9: #{tpu_custom_call.1} parent=1 // pred_fallthru
      _
    // Predicated region
    $region10: #{tpu_custom_call.1} parent=1 // pred_check
      _
    $region11: #{tpu_custom_call.1} parent=1 // pred_check_branch
      %41 = sbr.rel (0) target = $region13
    $region12: #{tpu_custom_call.1} parent=1 // pred_region
      _
    $region13: #{tpu_custom_call.1} parent=1 // pred_fallthru
      _
    // Predicated region
    $region14: #{tpu_custom_call.1} parent=1 // pred_check
      _
    $region15: #{tpu_custom_call.1} parent=1 // pred_check_branch
      %43 = sbr.rel (0) target = $region17
    $region16: #{tpu_custom_call.1} parent=1 // pred_region
      %s45 = ssub.s32 2048, 2048
      %46 = vsyncadd [#allocation6], %s45
      %s47 = sshll.u32 [#allocation7], 4
      %s48 = int_to_ptr.vmem [resolvable:$true] %s47
      %53 = dma.hbm_to_vmem [thread:$0]  %s3, 2048, %s48, [#allocation6], 128, 128, 8
    $region17: #{tpu_custom_call.1} parent=1 // pred_fallthru
      _
    // Predicated region
    $region18: #{tpu_custom_call.1} parent=1 // pred_check
      _
    $region19: #{tpu_custom_call.1} parent=1 // pred_check_branch
      %55 = sbr.rel (0) target = $region21
    $region20: #{tpu_custom_call.1} parent=1 // pred_region
      _
    $region21: #{tpu_custom_call.1} parent=1 // pred_fallthru
      _
    // Predicated region
    $region22: #{tpu_custom_call.1} parent=1 // pred_check
      _
    $region23: #{tpu_custom_call.1} parent=1 // pred_check_branch
      %57 = sbr.rel (0) target = $region25
    $region24: #{tpu_custom_call.1} parent=1 // pred_region
      %s59 = ssub.s32 2048, 2048
      %60 = vsyncadd [#allocation9], %s59
      %s61 = sshll.u32 [#allocation8], 4
      %s62 = int_to_ptr.vmem [resolvable:$true] %s61
      %67 = dma.hbm_to_vmem [thread:$0]  %s5, 2048, %s62, [#allocation9], 128, 128, 8
    $region25: #{tpu_custom_call.1} parent=1 // pred_fallthru
      _
    // Predicated region
    $region26: #{tpu_custom_call.1} parent=1 // pred_check
      _
    $region27: #{tpu_custom_call.1} parent=1 // pred_check_branch
      %69 = sbr.rel (0) target = $region29
    $region28: #{tpu_custom_call.1} parent=1 // pred_region
      _
    $region29: #{tpu_custom_call.1} parent=1 // pred_fallthru
      _
    // Predicated region
    $region30: #{tpu_custom_call.1} parent=1 // pred_check
      _
    $region31: #{tpu_custom_call.1} parent=1 // pred_check_branch
      %71 = sbr.rel (0) target = $region33
    $region32: #{tpu_custom_call.1} parent=1 // pred_region
      %s73 = ssub.s32 4096, 4096
      %74 = vsyncadd [#allocation9], %s73
      %s75 = sshll.u32 [#allocation10], 4
      %s76 = int_to_ptr.vmem [resolvable:$true] %s75
      %81 = dma.hbm_to_vmem [thread:$0]  %s7, 4096, %s76, [#allocation9], 128, 128, 8
    $region33: #{tpu_custom_call.1} parent=1 // pred_fallthru
      _
    // Predicated region
    $region34: #{tpu_custom_call.1} parent=1 // pred_check
      _
    $region35: #{tpu_custom_call.1} parent=1 // pred_check_branch
      %83 = sbr.rel (0) target = $region37
    $region36: #{tpu_custom_call.1} parent=1 // pred_region
      _
    $region37: #{tpu_custom_call.1} parent=1 // pred_fallthru
      _
    // Predicated region
    $region38: #{tpu_custom_call.1} parent=1 // pred_check
      _
    $region39: #{tpu_custom_call.1} parent=1 // pred_check_branch
      %85 = sbr.rel (0) target = $region41
    $region40: #{tpu_custom_call.1} parent=1 // pred_region
      %86 = dma.done [#allocation3], 128
    $region41: #{tpu_custom_call.1} parent=1 // pred_fallthru
      _
    // Predicated region
    $region42: #{tpu_custom_call.1} parent=1 // pred_check
      _
    $region43: #{tpu_custom_call.1} parent=1 // pred_check_branch
      %88 = sbr.rel (0) target = $region45
    $region44: #{tpu_custom_call.1} parent=1 // pred_region
      %89 = dma.done [#allocation6], 4096
    $region45: #{tpu_custom_call.1} parent=1 // pred_fallthru
      _
    // Predicated region
    $region46: #{tpu_custom_call.1} parent=1 // pred_check
      _
    $region47: #{tpu_custom_call.1} parent=1 // pred_check_branch
      %91 = sbr.rel (0) target = $region49
    $region48: #{tpu_custom_call.1} parent=1 // pred_region
      %92 = dma.done [#allocation6], 2048
    $region49: #{tpu_custom_call.1} parent=1 // pred_fallthru
      _
    // Predicated region
    $region50: #{tpu_custom_call.1} parent=1 // pred_check
      _
    $region51: #{tpu_custom_call.1} parent=1 // pred_check_branch
      %94 = sbr.rel (0) target = $region53
    $region52: #{tpu_custom_call.1} parent=1 // pred_region
      %95 = dma.done [#allocation9], 2048
    $region53: #{tpu_custom_call.1} parent=1 // pred_fallthru
      _
    // Predicated region
    $region54: #{tpu_custom_call.1} parent=1 // pred_check
      _
    $region55: #{tpu_custom_call.1} parent=1 // pred_check_branch
      %97 = sbr.rel (0) target = $region57
    $region56: #{tpu_custom_call.1} parent=1 // pred_region
      %98 = dma.done [#allocation9], 4096
    $region57: #{tpu_custom_call.1} parent=1 // pred_fallthru
      _
    %v99 = vld [vmem:[#allocation2] sm:$0xff]
    %v100 = vld [vmem:[#allocation5] sm:$0xff]
    %v101 = vld [vmem:[#allocation5 + $0x8] sm:$0xff]
    %v102 = vld [vmem:[#allocation5 + $0x10] sm:$0xff]
    %v103 = vld [vmem:[#allocation5 + $0x18] sm:$0xff]
    %v104 = vld [vmem:[#allocation5 + $0x20] sm:$0xff]
    %v105 = vld [vmem:[#allocation5 + $0x28] sm:$0xff]
    %v106 = vld [vmem:[#allocation5 + $0x30] sm:$0xff]
    %v107 = vld [vmem:[#allocation5 + $0x38] sm:$0xff]
    %v108 = vld [vmem:[#allocation5 + $0x40] sm:$0xff]
    %v109 = vld [vmem:[#allocation5 + $0x48] sm:$0xff]
    %v110 = vld [vmem:[#allocation5 + $0x50] sm:$0xff]
    %v111 = vld [vmem:[#allocation5 + $0x58] sm:$0xff]
    %v112 = vld [vmem:[#allocation5 + $0x60] sm:$0xff]
    %v113 = vld [vmem:[#allocation5 + $0x68] sm:$0xff]
    %v114 = vld [vmem:[#allocation5 + $0x70] sm:$0xff]
    %v115 = vld [vmem:[#allocation5 + $0x78] sm:$0xff]
    %v116 = vld [vmem:[#allocation5 + $0x80] sm:$0xff]
    %v117 = vld [vmem:[#allocation5 + $0x88] sm:$0xff]
    %v118 = vld [vmem:[#allocation5 + $0x90] sm:$0xff]
    %v119 = vld [vmem:[#allocation5 + $0x98] sm:$0xff]
    %v120 = vld [vmem:[#allocation5 + $0xa0] sm:$0xff]
    %v121 = vld [vmem:[#allocation5 + $0xa8] sm:$0xff]
    %v122 = vld [vmem:[#allocation5 + $0xb0] sm:$0xff]
    %v123 = vld [vmem:[#allocation5 + $0xb8] sm:$0xff]
    %v124 = vld [vmem:[#allocation5 + $0xc0] sm:$0xff]
    %v125 = vld [vmem:[#allocation5 + $0xc8] sm:$0xff]
    %v126 = vld [vmem:[#allocation5 + $0xd0] sm:$0xff]
    %v127 = vld [vmem:[#allocation5 + $0xd8] sm:$0xff]
    %v128 = vld [vmem:[#allocation5 + $0xe0] sm:$0xff]
    %v129 = vld [vmem:[#allocation5 + $0xe8] sm:$0xff]
    %v130 = vld [vmem:[#allocation5 + $0xf0] sm:$0xff]
    %v131 = vld [vmem:[#allocation5 + $0xf8] sm:$0xff]
    %v132 = vld [vmem:[%s2] sm:$0x3]
    %v134 = vlaneseq
    %v135 = vshrl.u32 %v134, 7
    %v136 = vsub.s32 0, %v135
    %v137 = vrot.slane %v132, %v136
    %v138 = vlaneseq
    %v139 = vshrl.u32 %v138, 7
    %v140 = vsub.s32 1, %v139
    %v141 = vrot.slane %v132, %v140
    %144 = vmatprep.subr.mxu0 %v101
    %145 = vmatpush1.msra.mxu0 %v100
    %146 = vmatprep.subr.mxu0 %v103
    %147 = vmatpush1.msra.mxu0 %v102
    %148 = vmatprep.subr.mxu0 %v105
    %149 = vmatpush1.msra.mxu0 %v104
    %150 = vmatprep.subr.mxu0 %v107
    %151 = vmatpush1.msra.mxu0 %v106
    %152 = vmatprep.subr.mxu0 %v109
    %153 = vmatpush1.msra.mxu0 %v108
    %154 = vmatprep.subr.mxu0 %v111
    %155 = vmatpush1.msra.mxu0 %v110
    %156 = vmatprep.subr.mxu0 %v113
    %157 = vmatpush1.msra.mxu0 %v112
    %158 = vmatprep.subr.mxu0 %v115
    %159 = vmatpush1.msra.mxu0 %v114
    %160 = vmatprep.subr.mxu0 %v117
    %161 = vmatpush1.msra.mxu0 %v116
    %162 = vmatprep.subr.mxu0 %v119
    %163 = vmatpush1.msra.mxu0 %v118
    %164 = vmatprep.subr.mxu0 %v121
    %165 = vmatpush1.msra.mxu0 %v120
    %166 = vmatprep.subr.mxu0 %v123
    %167 = vmatpush1.msra.mxu0 %v122
    %168 = vmatprep.subr.mxu0 %v125
    %169 = vmatpush1.msra.mxu0 %v124
    %170 = vmatprep.subr.mxu0 %v127
    %171 = vmatpush1.msra.mxu0 %v126
    %172 = vmatprep.subr.mxu0 %v129
    %173 = vmatpush1.msra.mxu0 %v128
    %174 = vmatprep.subr.mxu0 %v131
    %175 = vmatpush1.msra.mxu0 %v130
    %176 = vmatprep.subr.mxu0 0.0
    %177 = vmatpush1.msra.mxu0 0.0
    %178 = vmatprep.subr.mxu0 0.0
    %179 = vmatpush1.msra.mxu0 0.0
    %180 = vmatprep.subr.mxu0 0.0
    %181 = vmatpush1.msra.mxu0 0.0
    %182 = vmatprep.subr.mxu0 0.0
    %183 = vmatpush1.msra.mxu0 0.0
    %184 = vmatprep.subr.mxu0 0.0
    %185 = vmatpush1.msra.mxu0 0.0
    %186 = vmatprep.subr.mxu0 0.0
    %187 = vmatpush1.msra.mxu0 0.0
    %188 = vmatprep.subr.mxu0 0.0
    %189 = vmatpush1.msra.mxu0 0.0
    %190 = vmatprep.subr.mxu0 0.0
    %191 = vmatpush1.msra.mxu0 0.0
    %192 = vmatprep.subr.mxu0 0.0
    %193 = vmatpush1.msra.mxu0 0.0
    %194 = vmatprep.subr.mxu0 0.0
    %195 = vmatpush1.msra.mxu0 0.0
    %196 = vmatprep.subr.mxu0 0.0
    %197 = vmatpush1.msra.mxu0 0.0
    %198 = vmatprep.subr.mxu0 0.0
    %199 = vmatpush1.msra.mxu0 0.0
    %200 = vmatprep.subr.mxu0 0.0
    %201 = vmatpush1.msra.mxu0 0.0
    %202 = vmatprep.subr.mxu0 0.0
    %203 = vmatpush1.msra.mxu0 0.0
    %204 = vmatprep.subr.mxu0 0.0
    %205 = vmatpush1.msra.mxu0 0.0
    %206 = vmatprep.subr.mxu0 0.0
    %207 = vmatpush1.msra.mxu0 0.0
    %208 = vmatprep.mubr.f32.mxu0 0.0
    %209 = vmatmul.mubr.f32.gmra.mrb[0].mxu0 %v99
    %v210 = vpop.f32.mrb[0].mxu0
    %v211 = vadd.f32 %v137, %v210
    %v212 = vpop.f32.mrb[0].mxu0
    %v213 = vadd.f32 %v141, %v212
    %214 = vdwg.mxu0
    %v215 = vmax.f32 %v211, 0.0
    %v216 = vmax.f32 %v213, 0.0
    %v217 = vld [vmem:[#allocation7] sm:$0xff]
    %v218 = vld [vmem:[#allocation7 + $0x8] sm:$0xff]
    %v219 = vld [vmem:[#allocation7 + $0x10] sm:$0xff]
    %v220 = vld [vmem:[#allocation7 + $0x18] sm:$0xff]
    %v221 = vld [vmem:[#allocation7 + $0x20] sm:$0xff]
    %v222 = vld [vmem:[#allocation7 + $0x28] sm:$0xff]
    %v223 = vld [vmem:[#allocation7 + $0x30] sm:$0xff]
    %v224 = vld [vmem:[#allocation7 + $0x38] sm:$0xff]
    %v225 = vld [vmem:[#allocation7 + $0x40] sm:$0xff]
    %v226 = vld [vmem:[#allocation7 + $0x48] sm:$0xff]
    %v227 = vld [vmem:[#allocation7 + $0x50] sm:$0xff]
    %v228 = vld [vmem:[#allocation7 + $0x58] sm:$0xff]
    %v229 = vld [vmem:[#allocation7 + $0x60] sm:$0xff]
    %v230 = vld [vmem:[#allocation7 + $0x68] sm:$0xff]
    %v231 = vld [vmem:[#allocation7 + $0x70] sm:$0xff]
    %v232 = vld [vmem:[#allocation7 + $0x78] sm:$0xff]
    %v233 = vld [vmem:[%s4] sm:$0x1]
    %v235 = vlaneseq
    %v236 = vshrl.u32 %v235, 7
    %v237 = vsub.s32 0, %v236
    %v238 = vrot.slane %v233, %v237
    %240 = vmatprep.subr.mxu0 0.0
    %241 = vmatpush1.msra.mxu0 %v217
    %242 = vmatprep.subr.mxu0 0.0
    %243 = vmatpush1.msra.mxu0 %v218
    %244 = vmatprep.subr.mxu0 0.0
    %245 = vmatpush1.msra.mxu0 %v219
    %246 = vmatprep.subr.mxu0 0.0
    %247 = vmatpush1.msra.mxu0 %v220
    %248 = vmatprep.subr.mxu0 0.0
    %249 = vmatpush1.msra.mxu0 %v221
    %250 = vmatprep.subr.mxu0 0.0
    %251 = vmatpush1.msra.mxu0 %v222
    %252 = vmatprep.subr.mxu0 0.0
    %253 = vmatpush1.msra.mxu0 %v223
    %254 = vmatprep.subr.mxu0 0.0
    %255 = vmatpush1.msra.mxu0 %v224
    %256 = vmatprep.subr.mxu0 0.0
    %257 = vmatpush1.msra.mxu0 %v225
    %258 = vmatprep.subr.mxu0 0.0
    %259 = vmatpush1.msra.mxu0 %v226
    %260 = vmatprep.subr.mxu0 0.0
    %261 = vmatpush1.msra.mxu0 %v227
    %262 = vmatprep.subr.mxu0 0.0
    %263 = vmatpush1.msra.mxu0 %v228
    %264 = vmatprep.subr.mxu0 0.0
    %265 = vmatpush1.msra.mxu0 %v229
    %266 = vmatprep.subr.mxu0 0.0
    %267 = vmatpush1.msra.mxu0 %v230
    %268 = vmatprep.subr.mxu0 0.0
    %269 = vmatpush1.msra.mxu0 %v231
    %270 = vmatprep.subr.mxu0 0.0
    %271 = vmatpush1.msra.mxu0 %v232
    %272 = vmatprep.subr.mxu0 0.0
    %273 = vmatpush1.msra.mxu0 0.0
    %274 = vmatprep.subr.mxu0 0.0
    %275 = vmatpush1.msra.mxu0 0.0
    %276 = vmatprep.subr.mxu0 0.0
    %277 = vmatpush1.msra.mxu0 0.0
    %278 = vmatprep.subr.mxu0 0.0
    %279 = vmatpush1.msra.mxu0 0.0
    %280 = vmatprep.subr.mxu0 0.0
    %281 = vmatpush1.msra.mxu0 0.0
    %282 = vmatprep.subr.mxu0 0.0
    %283 = vmatpush1.msra.mxu0 0.0
    %284 = vmatprep.subr.mxu0 0.0
    %285 = vmatpush1.msra.mxu0 0.0
    %286 = vmatprep.subr.mxu0 0.0
    %287 = vmatpush1.msra.mxu0 0.0
    %288 = vmatprep.subr.mxu0 0.0
    %289 = vmatpush1.msra.mxu0 0.0
    %290 = vmatprep.subr.mxu0 0.0
    %291 = vmatpush1.msra.mxu0 0.0
    %292 = vmatprep.subr.mxu0 0.0
    %293 = vmatpush1.msra.mxu0 0.0
    %294 = vmatprep.subr.mxu0 0.0
    %295 = vmatpush1.msra.mxu0 0.0
    %296 = vmatprep.subr.mxu0 0.0
    %297 = vmatpush1.msra.mxu0 0.0
    %298 = vmatprep.subr.mxu0 0.0
    %299 = vmatpush1.msra.mxu0 0.0
    %300 = vmatprep.subr.mxu0 0.0
    %301 = vmatpush1.msra.mxu0 0.0
    %302 = vmatprep.subr.mxu0 0.0
    %303 = vmatpush1.msra.mxu0 0.0
    %304 = vmatprep.mubr.f32.mxu0 0.0
    %305 = vmatmul.mubr.f32.gmra.mrb[0].mxu0 %v215
    %v306 = vpop.f32.mrb[0].mxu0
    %v307 = vadd.f32 %v238, %v306
    %v308 = vpop.f32.mrb[0].mxu0
    %309 = vdwg.mxu0
    %v310 = vmax.f32 %v307, 0.0
    %v311 = vld [vmem:[#allocation8] sm:$0xff]
    %v312 = vld [vmem:[#allocation8 + $0x8] sm:$0xff]
    %v313 = vld [vmem:[#allocation8 + $0x10] sm:$0xff]
    %v314 = vld [vmem:[#allocation8 + $0x18] sm:$0xff]
    %v315 = vld [vmem:[#allocation8 + $0x20] sm:$0xff]
    %v316 = vld [vmem:[#allocation8 + $0x28] sm:$0xff]
    %v317 = vld [vmem:[#allocation8 + $0x30] sm:$0xff]
    %v318 = vld [vmem:[#allocation8 + $0x38] sm:$0xff]
    %v319 = vld [vmem:[#allocation8 + $0x40] sm:$0xff]
    %v320 = vld [vmem:[#allocation8 + $0x48] sm:$0xff]
    %v321 = vld [vmem:[#allocation8 + $0x50] sm:$0xff]
    %v322 = vld [vmem:[#allocation8 + $0x58] sm:$0xff]
    %v323 = vld [vmem:[#allocation8 + $0x60] sm:$0xff]
    %v324 = vld [vmem:[#allocation8 + $0x68] sm:$0xff]
    %v325 = vld [vmem:[#allocation8 + $0x70] sm:$0xff]
    %v326 = vld [vmem:[#allocation8 + $0x78] sm:$0xff]
    %v327 = vld [vmem:[%s6] sm:$0x1]
    %v329 = vlaneseq
    %v330 = vshrl.u32 %v329, 7
    %v331 = vsub.s32 0, %v330
    %v332 = vrot.slane %v327, %v331
    %334 = vmatprep.subr.mxu0 0.0
    %335 = vmatpush1.msra.mxu0 %v311
    %336 = vmatprep.subr.mxu0 0.0
    %337 = vmatpush1.msra.mxu0 %v312
    %338 = vmatprep.subr.mxu0 0.0
    %339 = vmatpush1.msra.mxu0 %v313
    %340 = vmatprep.subr.mxu0 0.0
    %341 = vmatpush1.msra.mxu0 %v314
    %342 = vmatprep.subr.mxu0 0.0
    %343 = vmatpush1.msra.mxu0 %v315
    %344 = vmatprep.subr.mxu0 0.0
    %345 = vmatpush1.msra.mxu0 %v316
    %346 = vmatprep.subr.mxu0 0.0
    %347 = vmatpush1.msra.mxu0 %v317
    %348 = vmatprep.subr.mxu0 0.0
    %349 = vmatpush1.msra.mxu0 %v318
    %350 = vmatprep.subr.mxu0 0.0
    %351 = vmatpush1.msra.mxu0 %v319
    %352 = vmatprep.subr.mxu0 0.0
    %353 = vmatpush1.msra.mxu0 %v320
    %354 = vmatprep.subr.mxu0 0.0
    %355 = vmatpush1.msra.mxu0 %v321
    %356 = vmatprep.subr.mxu0 0.0
    %357 = vmatpush1.msra.mxu0 %v322
    %358 = vmatprep.subr.mxu0 0.0
    %359 = vmatpush1.msra.mxu0 %v323
    %360 = vmatprep.subr.mxu0 0.0
    %361 = vmatpush1.msra.mxu0 %v324
    %362 = vmatprep.subr.mxu0 0.0
    %363 = vmatpush1.msra.mxu0 %v325
    %364 = vmatprep.subr.mxu0 0.0
    %365 = vmatpush1.msra.mxu0 %v326
    %366 = vmatprep.subr.mxu0 0.0
    %367 = vmatpush1.msra.mxu0 0.0
    %368 = vmatprep.subr.mxu0 0.0
    %369 = vmatpush1.msra.mxu0 0.0
    %370 = vmatprep.subr.mxu0 0.0
    %371 = vmatpush1.msra.mxu0 0.0
    %372 = vmatprep.subr.mxu0 0.0
    %373 = vmatpush1.msra.mxu0 0.0
    %374 = vmatprep.subr.mxu0 0.0
    %375 = vmatpush1.msra.mxu0 0.0
    %376 = vmatprep.subr.mxu0 0.0
    %377 = vmatpush1.msra.mxu0 0.0
    %378 = vmatprep.subr.mxu0 0.0
    %379 = vmatpush1.msra.mxu0 0.0
    %380 = vmatprep.subr.mxu0 0.0
    %381 = vmatpush1.msra.mxu0 0.0
    %382 = vmatprep.subr.mxu0 0.0
    %383 = vmatpush1.msra.mxu0 0.0
    %384 = vmatprep.subr.mxu0 0.0
    %385 = vmatpush1.msra.mxu0 0.0
    %386 = vmatprep.subr.mxu0 0.0
    %387 = vmatpush1.msra.mxu0 0.0
    %388 = vmatprep.subr.mxu0 0.0
    %389 = vmatpush1.msra.mxu0 0.0
    %390 = vmatprep.subr.mxu0 0.0
    %391 = vmatpush1.msra.mxu0 0.0
    %392 = vmatprep.subr.mxu0 0.0
    %393 = vmatpush1.msra.mxu0 0.0
    %394 = vmatprep.subr.mxu0 0.0
    %395 = vmatpush1.msra.mxu0 0.0
    %396 = vmatprep.subr.mxu0 0.0
    %397 = vmatpush1.msra.mxu0 0.0
    %398 = vmatprep.mubr.f32.mxu0 0.0
    %399 = vmatmul.mubr.f32.gmra.mrb[0].mxu0 %v216
    %v400 = vpop.f32.mrb[0].mxu0
    %v401 = vadd.f32 %v332, %v400
    %v402 = vpop.f32.mrb[0].mxu0
    %403 = vdwg.mxu0
    %v404 = vmax.f32 %v401, 0.0
    %v405 = vld [vmem:[#allocation10] sm:$0xff]
    %v406 = vld [vmem:[#allocation10 + $0x8] sm:$0xff]
    %v407 = vld [vmem:[#allocation10 + $0x10] sm:$0xff]
    %v408 = vld [vmem:[#allocation10 + $0x18] sm:$0xff]
    %v409 = vld [vmem:[#allocation10 + $0x20] sm:$0xff]
    %v410 = vld [vmem:[#allocation10 + $0x28] sm:$0xff]
    %v411 = vld [vmem:[#allocation10 + $0x30] sm:$0xff]
    %v412 = vld [vmem:[#allocation10 + $0x38] sm:$0xff]
    %v413 = vld [vmem:[#allocation10 + $0x40] sm:$0xff]
    %v414 = vld [vmem:[#allocation10 + $0x48] sm:$0xff]
    %v415 = vld [vmem:[#allocation10 + $0x50] sm:$0xff]
    %v416 = vld [vmem:[#allocation10 + $0x58] sm:$0xff]
    %v417 = vld [vmem:[#allocation10 + $0x60] sm:$0xff]
    %v418 = vld [vmem:[#allocation10 + $0x68] sm:$0xff]
    %v419 = vld [vmem:[#allocation10 + $0x70] sm:$0xff]
    %v420 = vld [vmem:[#allocation10 + $0x78] sm:$0xff]
    %v421 = vld [vmem:[#allocation10 + $0x80] sm:$0xff]
    %v422 = vld [vmem:[#allocation10 + $0x88] sm:$0xff]
    %v423 = vld [vmem:[#allocation10 + $0x90] sm:$0xff]
    %v424 = vld [vmem:[#allocation10 + $0x98] sm:$0xff]
    %v425 = vld [vmem:[#allocation10 + $0xa0] sm:$0xff]
    %v426 = vld [vmem:[#allocation10 + $0xa8] sm:$0xff]
    %v427 = vld [vmem:[#allocation10 + $0xb0] sm:$0xff]
    %v428 = vld [vmem:[#allocation10 + $0xb8] sm:$0xff]
    %v429 = vld [vmem:[#allocation10 + $0xc0] sm:$0xff]
    %v430 = vld [vmem:[#allocation10 + $0xc8] sm:$0xff]
    %v431 = vld [vmem:[#allocation10 + $0xd0] sm:$0xff]
    %v432 = vld [vmem:[#allocation10 + $0xd8] sm:$0xff]
    %v433 = vld [vmem:[#allocation10 + $0xe0] sm:$0xff]
    %v434 = vld [vmem:[#allocation10 + $0xe8] sm:$0xff]
    %v435 = vld [vmem:[#allocation10 + $0xf0] sm:$0xff]
    %v436 = vld [vmem:[#allocation10 + $0xf8] sm:$0xff]
    %437 = vmatprep.subr.mxu0 0.0
    %438 = vmatpush1.msra.mxu0 %v421
    %439 = vmatprep.subr.mxu0 0.0
    %440 = vmatpush1.msra.mxu0 %v422
    %441 = vmatprep.subr.mxu0 0.0
    %442 = vmatpush1.msra.mxu0 %v423
    %443 = vmatprep.subr.mxu0 0.0
    %444 = vmatpush1.msra.mxu0 %v424
    %445 = vmatprep.subr.mxu0 0.0
    %446 = vmatpush1.msra.mxu0 %v425
    %447 = vmatprep.subr.mxu0 0.0
    %448 = vmatpush1.msra.mxu0 %v426
    %449 = vmatprep.subr.mxu0 0.0
    %450 = vmatpush1.msra.mxu0 %v427
    %451 = vmatprep.subr.mxu0 0.0
    %452 = vmatpush1.msra.mxu0 %v428
    %453 = vmatprep.subr.mxu0 0.0
    %454 = vmatpush1.msra.mxu0 %v429
    %455 = vmatprep.subr.mxu0 0.0
    %456 = vmatpush1.msra.mxu0 %v430
    %457 = vmatprep.subr.mxu0 0.0
    %458 = vmatpush1.msra.mxu0 %v431
    %459 = vmatprep.subr.mxu0 0.0
    %460 = vmatpush1.msra.mxu0 %v432
    %461 = vmatprep.subr.mxu0 0.0
    %462 = vmatpush1.msra.mxu0 %v433
    %463 = vmatprep.subr.mxu0 0.0
    %464 = vmatpush1.msra.mxu0 %v434
    %465 = vmatprep.subr.mxu0 0.0
    %466 = vmatpush1.msra.mxu0 %v435
    %467 = vmatprep.subr.mxu0 0.0
    %468 = vmatpush1.msra.mxu0 %v436
    %469 = vmatprep.subr.mxu0 0.0
    %470 = vmatpush1.msra.mxu0 0.0
    %471 = vmatprep.subr.mxu0 0.0
    %472 = vmatpush1.msra.mxu0 0.0
    %473 = vmatprep.subr.mxu0 0.0
    %474 = vmatpush1.msra.mxu0 0.0
    %475 = vmatprep.subr.mxu0 0.0
    %476 = vmatpush1.msra.mxu0 0.0
    %477 = vmatprep.subr.mxu0 0.0
    %478 = vmatpush1.msra.mxu0 0.0
    %479 = vmatprep.subr.mxu0 0.0
    %480 = vmatpush1.msra.mxu0 0.0
    %481 = vmatprep.subr.mxu0 0.0
    %482 = vmatpush1.msra.mxu0 0.0
    %483 = vmatprep.subr.mxu0 0.0
    %484 = vmatpush1.msra.mxu0 0.0
    %485 = vmatprep.subr.mxu0 0.0
    %486 = vmatpush1.msra.mxu0 0.0
    %487 = vmatprep.subr.mxu0 0.0
    %488 = vmatpush1.msra.mxu0 0.0
    %489 = vmatprep.subr.mxu0 0.0
    %490 = vmatpush1.msra.mxu0 0.0
    %491 = vmatprep.subr.mxu0 0.0
    %492 = vmatpush1.msra.mxu0 0.0
    %493 = vmatprep.subr.mxu0 0.0
    %494 = vmatpush1.msra.mxu0 0.0
    %495 = vmatprep.subr.mxu0 0.0
    %496 = vmatpush1.msra.mxu0 0.0
    %497 = vmatprep.subr.mxu0 0.0
    %498 = vmatpush1.msra.mxu0 0.0
    %499 = vmatprep.subr.mxu0 0.0
    %500 = vmatpush1.msra.mxu0 0.0
    %501 = vmatprep.mubr.f32.mxu0 0.0
    %502 = vmatmul.mubr.f32.gmra.mrb[0].mxu0 %v404
    %v503 = vpop.f32.mrb[0].mxu0
    %v504 = vadd.f32 0.0, %v503
    %v505 = vpop.f32.mrb[0].mxu0
    %506 = vdwg.mxu0
    %507 = vmatprep.subr.mxu0 0.0
    %508 = vmatpush1.msra.mxu0 %v405
    %509 = vmatprep.subr.mxu0 0.0
    %510 = vmatpush1.msra.mxu0 %v406
    %511 = vmatprep.subr.mxu0 0.0
    %512 = vmatpush1.msra.mxu0 %v407
    %513 = vmatprep.subr.mxu0 0.0
    %514 = vmatpush1.msra.mxu0 %v408
    %515 = vmatprep.subr.mxu0 0.0
    %516 = vmatpush1.msra.mxu0 %v409
    %517 = vmatprep.subr.mxu0 0.0
    %518 = vmatpush1.msra.mxu0 %v410
    %519 = vmatprep.subr.mxu0 0.0
    %520 = vmatpush1.msra.mxu0 %v411
    %521 = vmatprep.subr.mxu0 0.0
    %522 = vmatpush1.msra.mxu0 %v412
    %523 = vmatprep.subr.mxu0 0.0
    %524 = vmatpush1.msra.mxu0 %v413
    %525 = vmatprep.subr.mxu0 0.0
    %526 = vmatpush1.msra.mxu0 %v414
    %527 = vmatprep.subr.mxu0 0.0
    %528 = vmatpush1.msra.mxu0 %v415
    %529 = vmatprep.subr.mxu0 0.0
    %530 = vmatpush1.msra.mxu0 %v416
    %531 = vmatprep.subr.mxu0 0.0
    %532 = vmatpush1.msra.mxu0 %v417
    %533 = vmatprep.subr.mxu0 0.0
    %534 = vmatpush1.msra.mxu0 %v418
    %535 = vmatprep.subr.mxu0 0.0
    %536 = vmatpush1.msra.mxu0 %v419
    %537 = vmatprep.subr.mxu0 0.0
    %538 = vmatpush1.msra.mxu0 %v420
    %539 = vmatprep.subr.mxu0 0.0
    %540 = vmatpush1.msra.mxu0 0.0
    %541 = vmatprep.subr.mxu0 0.0
    %542 = vmatpush1.msra.mxu0 0.0
    %543 = vmatprep.subr.mxu0 0.0
    %544 = vmatpush1.msra.mxu0 0.0
    %545 = vmatprep.subr.mxu0 0.0
    %546 = vmatpush1.msra.mxu0 0.0
    %547 = vmatprep.subr.mxu0 0.0
    %548 = vmatpush1.msra.mxu0 0.0
    %549 = vmatprep.subr.mxu0 0.0
    %550 = vmatpush1.msra.mxu0 0.0
    %551 = vmatprep.subr.mxu0 0.0
    %552 = vmatpush1.msra.mxu0 0.0
    %553 = vmatprep.subr.mxu0 0.0
    %554 = vmatpush1.msra.mxu0 0.0
    %555 = vmatprep.subr.mxu0 0.0
    %556 = vmatpush1.msra.mxu0 0.0
    %557 = vmatprep.subr.mxu0 0.0
    %558 = vmatpush1.msra.mxu0 0.0
    %559 = vmatprep.subr.mxu0 0.0
    %560 = vmatpush1.msra.mxu0 0.0
    %561 = vmatprep.subr.mxu0 0.0
    %562 = vmatpush1.msra.mxu0 0.0
    %563 = vmatprep.subr.mxu0 0.0
    %564 = vmatpush1.msra.mxu0 0.0
    %565 = vmatprep.subr.mxu0 0.0
    %566 = vmatpush1.msra.mxu0 0.0
    %567 = vmatprep.subr.mxu0 0.0
    %568 = vmatpush1.msra.mxu0 0.0
    %569 = vmatprep.subr.mxu0 0.0
    %570 = vmatpush1.msra.mxu0 0.0
    %571 = vmatprep.mubr.f32.mxu0 0.0
    %572 = vmatmul.mubr.f32.gmra.mrb[0].mxu0 %v310
    %v573 = vpop.f32.mrb[0].mxu0
    %v574 = vadd.f32 %v504, %v573
    %v575 = vpop.f32.mrb[0].mxu0
    %576 = vdwg.mxu0
    %v577 = vld [vmem:[%s8] sm:$0x1]
    %v579 = vlaneseq
    %v580 = vshrl.u32 %v579, 7
    %v581 = vsub.s32 0, %v580
    %v582 = vrot.slane %v577, %v581
    %v584 = vadd.f32 %v574, %v582
    %585 = vst [vmem:[#allocation11] sm:$0xff] %v584
    // Predicated region
    $region58: #{tpu_custom_call.1} parent=1 // pred_check
      _
    $region59: #{tpu_custom_call.1} parent=1 // pred_check_branch
      %587 = sbr.rel (0) target = $region61
    $region60: #{tpu_custom_call.1} parent=1 // pred_region
      %s589 = ssub.s32 128, 128
      %590 = vsyncadd [#allocation4], %s589
      %s592 = sshll.u32 [#allocation11], 4
      %s593 = int_to_ptr.vmem [resolvable:$true] %s592
      %595 = dma.vmem_to_hbm [thread:$0]  %s593, 128, %s9, [#allocation4]
    $region61: #{tpu_custom_call.1} parent=1 // pred_fallthru
      _
    // Predicated region
    $region62: #{tpu_custom_call.1} parent=1 // pred_check
      _
    $region63: #{tpu_custom_call.1} parent=1 // pred_check_branch
      %597 = sbr.rel (0) target = $region65
    $region64: #{tpu_custom_call.1} parent=1 // pred_region
      %598 = dma.done [#allocation4], 128
    $region65: #{tpu_custom_call.1} parent=1 // pred_fallthru
      _
    %599 = vsyncpa [#allocation3], 1
    %600 = vsyncpa [#allocation6], 1
    %601 = vsyncpa [#allocation9], 1
    %602 = vsyncpa [#allocation4], 1

</llo_original>
